<compile_context>
chip_gen: v5e
topology: v5e:2x2
jax: 0.10.0
libtpu: 0.0.40
codegen_flags: <defaults>
</compile_context>

<pallas_src>
import functools

import jax
import jax.numpy as jnp
from jax import lax
from jax.experimental import pallas as pl
from jax.experimental.pallas import tpu as pltpu

EPS = 1e-5          # nn.BatchNorm2d default eps
NEG_SLOPE = 0.1     # nn.LeakyReLU(0.1)


def _round_up(x, m):
    return (x + m - 1) // m * m


def _tpu_kind():
    try:
        return jax.devices()[0].device_kind.lower()
    except Exception:
        return ""


# ---------------------------------------------------------------------------
# Pass 1: conv matmul (bf16 MXU, f32 accumulation) + per-channel sum / sumsq.
# Grid = (n_co, n_m); m is innermost so the per-co stat output blocks keep the
# same block index across the M sweep and act as VMEM-resident accumulators.
# ---------------------------------------------------------------------------
def conv_stats_kernel(patches_ref, w_ref, conv_ref, sum_ref, sumsq_ref):
    m = pl.program_id(1)

    @pl.when(m == 0)
    def _():
        sum_ref[...] = jnp.zeros_like(sum_ref)
        sumsq_ref[...] = jnp.zeros_like(sumsq_ref)

    # bf16 x bf16 -> f32 accumulation on the MXU (default precision).
    acc = jnp.dot(patches_ref[...], w_ref[...],
                  preferred_element_type=jnp.float32)      # (tile_m, TILE_CO) f32

    # Stash the raw conv tile in bf16 -- pass 2 reloads it instead of recomputing.
    conv_ref[...] = acc.astype(conv_ref.dtype)

    # BN statistics from the f32 accumulator (zero padding contributes nothing).
    sum_ref[...] += jnp.sum(acc, axis=0, keepdims=True)
    sumsq_ref[...] += jnp.sum(acc * acc, axis=0, keepdims=True)


# ---------------------------------------------------------------------------
# Pass 2: reload stashed conv tile, fold BN into one per-channel FMA, LeakyReLU.
# Pure elementwise -> both grid axes are "parallel".
# ---------------------------------------------------------------------------
def bn_act_kernel(conv_ref, sum_ref, sumsq_ref, gamma_ref, beta_ref, o_ref, *, inv_m):
    mean = sum_ref[...] * inv_m
    # TODO(synk): E[x^2]-E[x]^2 in f32 can cancel for very large M / large-mean
    # channels; a Chan/Welford-style cross-tile combine would be safer.
    var = jnp.maximum(sumsq_ref[...] * inv_m - mean * mean, 0.0)
    scale = gamma_ref[...] * lax.rsqrt(var + EPS)          # folded BN scale
    shift = beta_ref[...] - mean * scale                   # folded BN shift
    y = conv_ref[...].astype(jnp.float32) * scale + shift
    o_ref[...] = jnp.where(y >= 0.0, y, NEG_SLOPE * y).astype(o_ref.dtype)


def cnn_block_forward(x_nchw, weight, gamma, beta, *, stride=1, padding=1,
                      tile_m=2048, out_dtype=jnp.float32):
    """x_nchw: (N, C_in, H, W) f32; weight: (C_out, C_in, KH, KW) f32 (PyTorch OIHW)."""
    N, C_in, H, W = x_nchw.shape
    C_out, _, KH, KW = weight.shape

    # ---- glue: NCHW -> NHWC, spatial zero-pad, im2col (XLA side) ----
    x = jnp.transpose(x_nchw, (0, 2, 3, 1)).astype(jnp.float32)          # NHWC
    x = jnp.pad(x, ((0, 0), (padding, padding), (padding, padding), (0, 0)))
    H_out = (H + 2 * padding - KH) // stride + 1
    W_out = (W + 2 * padding - KW) // stride + 1

    cols = []
    for kh in range(KH):
        for kw in range(KW):
            sl = x[:, kh:kh + stride * H_out:stride, kw:kw + stride * W_out:stride, :]
            cols.append(sl)                                              # (N,Hout,Wout,Cin)
    patches = jnp.concatenate(cols, axis=-1).reshape(N * H_out * W_out, KH * KW * C_in)

    # weight (O,I,KH,KW) -> (KH,KW,I,O) -> (KH*KW*I, O); matches (kh, kw, cin) order.
    w_mat = jnp.transpose(weight, (2, 3, 1, 0)).reshape(KH * KW * C_in, C_out)

    M = N * H_out * W_out
    Kd = KH * KW * C_in
    Kd_p = _round_up(Kd, 128)      # lane-dense rows (unmasked loads); see header note
    Co_p = _round_up(C_out, 128)

    # ---- per-generation VMEM budget / limit and MXU width ----
    kind = _tpu_kind()
    if ("v5" in kind) or ("v6" in kind):        # 128 MiB physical VMEM
        vmem_budget, vmem_limit = 56 * 1024 * 1024, 96 * 1024 * 1024
    else:                                        # v7x (64 MiB) / v4 / unknown
        vmem_budget, vmem_limit = 20 * 1024 * 1024, 32 * 1024 * 1024
    wide_mxu = ("v6" in kind) or ("7" in kind)   # 256-wide MXU on v6e/v7x

    out_itemsize = jnp.dtype(out_dtype).itemsize

    def k1_bytes(tm, tco):
        # double-buffered patches (bf16) + weights (bf16) + conv stash (bf16)
        # + tiny per-channel stat vectors.  (pl.Buffered(1) on the weight spec
        # could reclaim one weight buffer on v7x; it is accounted here instead.)
        return (2 * tm * Kd_p * 2) + (2 * Kd_p * tco * 2) + (2 * tm * tco * 2) \
            + 8 * tco * 4

    def k2_bytes(tm, tco):
        return (2 * tm * tco * 2) + (2 * tm * tco * out_itemsize) + 16 * tco * 4

    # TILE_CO: keep the whole weight panel resident when it fits, so the
    # (KH*KW-inflated) patches matrix is streamed from HBM exactly once.
    tm_probe = _round_up(max(128, min(tile_m, _round_up(M, 128), 512)), 128)
    co_fallback = 256 if (wide_mxu and Co_p % 256 == 0) else 128
    TILE_CO = Co_p if k1_bytes(tm_probe, Co_p) <= vmem_budget else co_fallback

    # TILE_M: as large as the budget allows; shrink only if necessary.
    tile_m = _round_up(max(128, min(tile_m, _round_up(M, 128))), 128)
    while tile_m > 128 and max(k1_bytes(tile_m, TILE_CO),
                               k2_bytes(tile_m, TILE_CO)) > vmem_budget:
        tile_m = _round_up(tile_m // 2, 128)

    M_p = _round_up(M, tile_m)
    n_m = M_p // tile_m
    n_co = Co_p // TILE_CO

    # Zero padding everywhere: padded rows / K-cols / C_out-lanes contribute exactly
    # zero to sum/sumsq, and statistics divide by the true M.
    patches_p = jnp.zeros((M_p, Kd_p), jnp.bfloat16).at[:M, :Kd].set(
        patches.astype(jnp.bfloat16))
    w_p = jnp.zeros((Kd_p, Co_p), jnp.bfloat16).at[:Kd, :C_out].set(
        w_mat.astype(jnp.bfloat16))
    gamma_p = jnp.zeros((1, Co_p), jnp.float32).at[0, :C_out].set(gamma.astype(jnp.float32))
    beta_p = jnp.zeros((1, Co_p), jnp.float32).at[0, :C_out].set(beta.astype(jnp.float32))

    # ---- pass 1: conv + per-channel statistics ----
    conv_raw, ch_sum, ch_sumsq = pl.pallas_call(
        conv_stats_kernel,
        out_shape=(
            jax.ShapeDtypeStruct((M_p, Co_p), jnp.bfloat16),   # bf16 stash
            jax.ShapeDtypeStruct((1, Co_p), jnp.float32),      # per-channel sum
            jax.ShapeDtypeStruct((1, Co_p), jnp.float32),      # per-channel sumsq
        ),
        grid=(n_co, n_m),
        in_specs=[
            pl.BlockSpec((tile_m, Kd_p), lambda co, m: (m, 0)),      # patches: vary with m
            pl.BlockSpec((Kd_p, TILE_CO), lambda co, m: (0, co)),    # weights: vary with co
        ],
        out_specs=(
            pl.BlockSpec((tile_m, TILE_CO), lambda co, m: (m, co)),  # conv stash
            pl.BlockSpec((1, TILE_CO), lambda co, m: (0, co)),       # resident accumulator
            pl.BlockSpec((1, TILE_CO), lambda co, m: (0, co)),       # resident accumulator
        ),
        compiler_params=pltpu.CompilerParams(
            dimension_semantics=("parallel", "arbitrary"),
            vmem_limit_bytes=vmem_limit,
        ),
    )(patches_p, w_p)

    # ---- pass 2: folded BN + LeakyReLU over the stashed conv ----
    kernel2 = functools.partial(bn_act_kernel, inv_m=1.0 / float(M))
    out = pl.pallas_call(
        kernel2,
        out_shape=jax.ShapeDtypeStruct((M_p, Co_p), out_dtype),
        grid=(n_co, n_m),
        in_specs=[
            pl.BlockSpec((tile_m, TILE_CO), lambda co, m: (m, co)),  # stashed conv
            pl.BlockSpec((1, TILE_CO), lambda co, m: (0, co)),       # sum
            pl.BlockSpec((1, TILE_CO), lambda co, m: (0, co)),       # sumsq
            pl.BlockSpec((1, TILE_CO), lambda co, m: (0, co)),       # gamma
            pl.BlockSpec((1, TILE_CO), lambda co, m: (0, co)),       # beta
        ],
        out_specs=pl.BlockSpec((tile_m, TILE_CO), lambda co, m: (m, co)),
        compiler_params=pltpu.CompilerParams(
            dimension_semantics=("parallel", "parallel"),
            vmem_limit_bytes=vmem_limit,
        ),
    )(conv_raw, ch_sum, ch_sumsq, gamma_p, beta_p)

    out = out[:M, :C_out].reshape(N, H_out, W_out, C_out)
    return jnp.transpose(out, (0, 3, 1, 2))                  # back to NCHW


def _reference(x, weight, gamma, beta, *, stride=1, padding=1):
    conv = lax.conv_general_dilated(
        x, weight, window_strides=(stride, stride),
        padding=((padding, padding), (padding, padding)),
        dimension_numbers=("NCHW", "OIHW", "NCHW"),
        precision=lax.Precision.HIGHEST)
    mean = conv.mean(axis=(0, 2, 3), keepdims=True)
    var = conv.var(axis=(0, 2, 3), keepdims=True)            # biased, like BN training
    xhat = (conv - mean) * lax.rsqrt(var + EPS)
    y = xhat * gamma.reshape(1, -1, 1, 1) + beta.reshape(1, -1, 1, 1)
    return jnp.where(y >= 0, y, NEG_SLOPE * y)


if __name__ == "__main__":
    key = jax.random.PRNGKey(0)
    k_x, k_w, k_g, k_b = jax.random.split(key, 4)

    N, C_in, C_out, H, W = 2, 4, 8, 16, 16
    KH = KW = 3

    x = jax.random.normal(k_x, (N, C_in, H, W), dtype=jnp.float32)
    # Conv2d(4, 8, kernel_size=3, stride=1, padding=1, bias=False)
    weight = 0.1 * jax.random.normal(k_w, (C_out, C_in, KH, KW), dtype=jnp.float32)
    # BatchNorm2d affine params (perturbed from default init to exercise scale/shift)
    gamma = 1.0 + 0.1 * jax.random.normal(k_g, (C_out,), dtype=jnp.float32)
    beta = 0.1 * jax.random.normal(k_b, (C_out,), dtype=jnp.float32)

    # tile_m=128 -> 4 M-tiles: exercises cross-tile BN statistic accumulation.
    out = cnn_block_forward(x, weight, gamma, beta, stride=1, padding=1, tile_m=128)
    out = jax.block_until_ready(out)

    ref = _reference(x, weight, gamma, beta, stride=1, padding=1)
    assert out.shape == ref.shape == (N, C_out, H, W)
    max_err = float(jnp.max(jnp.abs(out - ref)))
    # bf16 matmul inputs + bf16 conv stash (intentional, per perf review) -> loose tol.
    assert jnp.allclose(out, ref, rtol=1e-2, atol=2e-2), \
        f"mismatch vs reference (max abs err {max_err})"

    print("KERNEL_OK")
</pallas_src>

<mosaic_0001>
module attributes {stable_mosaic.version = 11 : i64} {
  func.func @conv_stats_kernel(%arg0: i32, %arg1: i32, %arg2: memref<128x128xbf16, #tpu.memory_space<vmem>>, %arg3: memref<128x128xbf16, #tpu.memory_space<vmem>>, %arg4: memref<128x128xbf16, #tpu.memory_space<vmem>>, %arg5: memref<1x128xf32, #tpu.memory_space<vmem>>, %arg6: memref<1x128xf32, #tpu.memory_space<vmem>>) attributes {dimension_semantics = [#tpu.dimension_semantics<parallel>, #tpu.dimension_semantics<arbitrary>], iteration_bounds = array<i64: 1, 4>, scalar_prefetch = 0 : i64, scratch_operands = 0 : i64, tpu.core_type = #tpu.core_type<tc>, window_params = [{transform_indices = @transform_0, window_bounds = array<i64: 128, 128>}, {transform_indices = @transform_1, window_bounds = array<i64: 128, 128>}, {transform_indices = @transform_2, window_bounds = array<i64: 128, 128>}, {transform_indices = @transform_3, window_bounds = array<i64: 1, 128>}, {transform_indices = @transform_4, window_bounds = array<i64: 1, 128>}]} {
    %c0_i32 = arith.constant 0 : i32
    %0 = arith.cmpi eq, %arg1, %c0_i32 : i32
    %1 = arith.extui %0 : i1 to i32
    %c0_i32_0 = arith.constant 0 : i32
    %2 = arith.cmpi ne, %1, %c0_i32_0 : i32
    scf.if %2 {
      %cst_16 = arith.constant 0.000000e+00 : f32
      %19 = vector.broadcast %cst_16 : f32 to vector<1x128xf32>
      %c0_17 = arith.constant 0 : index
      %c0_18 = arith.constant 0 : index
      %20 = vector.load %arg5[%c0_17, %c0_18] : memref<1x128xf32, #tpu.memory_space<vmem>>, vector<1x128xf32>
      tpu.vector_store %arg5[%c0_17, %c0_18], %19 {strides = array<i32>} : memref<1x128xf32, #tpu.memory_space<vmem>>, vector<1x128xf32>,
      %cst_19 = arith.constant 0.000000e+00 : f32
      %21 = vector.broadcast %cst_19 : f32 to vector<1x128xf32>
      %c0_20 = arith.constant 0 : index
      %c0_21 = arith.constant 0 : index
      %22 = vector.load %arg6[%c0_20, %c0_21] : memref<1x128xf32, #tpu.memory_space<vmem>>, vector<1x128xf32>
      tpu.vector_store %arg6[%c0_20, %c0_21], %21 {strides = array<i32>} : memref<1x128xf32, #tpu.memory_space<vmem>>, vector<1x128xf32>,
    } else {
    }
    %c0 = arith.constant 0 : index
    %c0_1 = arith.constant 0 : index
    %3 = vector.load %arg2[%c0, %c0_1] : memref<128x128xbf16, #tpu.memory_space<vmem>>, vector<128x128xbf16>
    %c0_2 = arith.constant 0 : index
    %c0_3 = arith.constant 0 : index
    %4 = vector.load %arg3[%c0_2, %c0_3] : memref<128x128xbf16, #tpu.memory_space<vmem>>, vector<128x128xbf16>
    %cst = arith.constant dense<0.000000e+00> : vector<128x128xf32>
    %5 = tpu.matmul %3, %4, %cst {dimension_numbers = #tpu.dot_dimension_numbers<[1], [0], [0], [1], [0, 0, 1, 1], [], []>} : vector<128x128xbf16>, vector<128x128xbf16>, vector<128x128xf32> -> vector<128x128xf32>
    %6 = arith.truncf %5 : vector<128x128xf32> to vector<128x128xbf16>
    %c0_4 = arith.constant 0 : index
    %c0_5 = arith.constant 0 : index
    %7 = vector.load %arg4[%c0_4, %c0_5] : memref<128x128xbf16, #tpu.memory_space<vmem>>, vector<128x128xbf16>
    tpu.vector_store %arg4[%c0_4, %c0_5], %6 {strides = array<i32>} : memref<128x128xbf16, #tpu.memory_space<vmem>>, vector<128x128xbf16>,
    %c0_6 = arith.constant 0 : index
    %c0_7 = arith.constant 0 : index
    %8 = vector.load %arg5[%c0_6, %c0_7] : memref<1x128xf32, #tpu.memory_space<vmem>>, vector<1x128xf32>
    %cst_8 = arith.constant dense<0.000000e+00> : vector<128xf32>
    %9 = vector.multi_reduction <add>, %5, %cst_8 [0] : vector<128x128xf32> to vector<128xf32>
    %10 = vector.shape_cast %9 : vector<128xf32> to vector<1x128xf32>
    %11 = arith.addf %8, %10 : vector<1x128xf32>
    %c0_9 = arith.constant 0 : index
    %c0_10 = arith.constant 0 : index
    %12 = vector.load %arg5[%c0_9, %c0_10] : memref<1x128xf32, #tpu.memory_space<vmem>>, vector<1x128xf32>
    tpu.vector_store %arg5[%c0_9, %c0_10], %11 {strides = array<i32>} : memref<1x128xf32, #tpu.memory_space<vmem>>, vector<1x128xf32>,
    %c0_11 = arith.constant 0 : index
    %c0_12 = arith.constant 0 : index
    %13 = vector.load %arg6[%c0_11, %c0_12] : memref<1x128xf32, #tpu.memory_space<vmem>>, vector<1x128xf32>
    %14 = arith.mulf %5, %5 : vector<128x128xf32>
    %cst_13 = arith.constant dense<0.000000e+00> : vector<128xf32>
    %15 = vector.multi_reduction <add>, %14, %cst_13 [0] : vector<128x128xf32> to vector<128xf32>
    %16 = vector.shape_cast %15 : vector<128xf32> to vector<1x128xf32>
    %17 = arith.addf %13, %16 : vector<1x128xf32>
    %c0_14 = arith.constant 0 : index
    %c0_15 = arith.constant 0 : index
    %18 = vector.load %arg6[%c0_14, %c0_15] : memref<1x128xf32, #tpu.memory_space<vmem>>, vector<1x128xf32>
    tpu.vector_store %arg6[%c0_14, %c0_15], %17 {strides = array<i32>} : memref<1x128xf32, #tpu.memory_space<vmem>>, vector<1x128xf32>,
    return
  }
  func.func @transform_0(%arg0: i32, %arg1: i32) -> (i32, i32) {
    %c0_i32 = arith.constant 0 : i32
    %c0_i32_0 = arith.constant 0 : i32
    return %arg1, %c0_i32 : i32, i32
  }
  func.func @transform_1(%arg0: i32, %arg1: i32) -> (i32, i32) {
    %c0_i32 = arith.constant 0 : i32
    %c0_i32_0 = arith.constant 0 : i32
    return %c0_i32, %arg0 : i32, i32
  }
  func.func @transform_2(%arg0: i32, %arg1: i32) -> (i32, i32) {
    %c0_i32 = arith.constant 0 : i32
    return %arg1, %arg0 : i32, i32
  }
  func.func @transform_3(%arg0: i32, %arg1: i32) -> (i32, i32) {
    %c0_i32 = arith.constant 0 : i32
    %c0_i32_0 = arith.constant 0 : i32
    return %c0_i32, %arg0 : i32, i32
  }
  func.func @transform_4(%arg0: i32, %arg1: i32) -> (i32, i32) {
    %c0_i32 = arith.constant 0 : i32
    %c0_i32_0 = arith.constant 0 : i32
    return %c0_i32, %arg0 : i32, i32
  }
}

</mosaic_0001>

<llo_original>
// kernel: tpu_custom_call.1
$region0: #{tpu_custom_call.1}
  #allocation0 [shape = 'u32[]', space=smem, size = 0x4, offset = 0x4, fixed_abs, tag = 'smem constant byte address 0x4 - core index']
  #allocation1 [shape = 'u32[72,128]{1,0:T(1,128)}', space=vmem, size = 0x9000, scoped, tag = 'internal scratch']
  %s0 = inlined_call_operand.hbm [shape: bf16[512,128], index: 0, kind: input, shape index: {}]
  %s1 = inlined_call_operand.hbm [shape: bf16[128,128], index: 1, kind: input, shape index: {}]
  %s2 = inlined_call_operand.hbm [shape: bf16[512,128], index: 2, kind: output, shape index: {0}]
  %s3 = inlined_call_operand.hbm [shape: f32[1,128], index: 3, kind: output, shape index: {1}]
  %s4 = inlined_call_operand.hbm [shape: f32[1,128], index: 4, kind: output, shape index: {2}]
  %5 = xla_tuple %s2, %s3, %s4
  %s6 = sld [smem:[#allocation0]]
  $region69: #{tpu_custom_call.1} parent=0
    _
  %s8 = ssub.s32 1, %s6
  %s9 = scalar_select 0, %s8, %s6
  $region1: #{tpu_custom_call.1} parent=0
    #allocation2 [shape = 'u8[65536]{0}', space=vmem, size = 0x10000, scoped, tag = 'input window, operand 0']
    #allocation3 [shape = 's32[2]{0}', space=sflag, size = 0x8, scoped, tag = 'scoped memory for tpu_custom_call.1']
    #allocation4 [shape = 's32[2]{0}', space=sflag, size = 0x8, scoped, tag = 'scoped memory for tpu_custom_call.1']
    #allocation5 [shape = 'u8[32768]{0}', space=vmem, size = 0x8000, scoped, tag = 'input window, operand 1, single buffered']
    #allocation6 [shape = 's32[1]{0}', space=sflag, size = 0x4, scoped, tag = 'scoped memory for tpu_custom_call.1']
    #allocation7 [shape = 'u8[65536]{0}', space=vmem, size = 0x10000, scoped, tag = 'output window, operand 0']
    #allocation8 [shape = 'u8[512]{0}', space=vmem, size = 0x400, scoped, tag = 'output window, operand 1, single buffered']
    #allocation9 [shape = 's32[1]{0}', space=sflag, size = 0x4, scoped, tag = 'scoped memory for tpu_custom_call.1']
    #allocation10 [shape = 'u8[512]{0}', space=vmem, size = 0x400, scoped, tag = 'output window, operand 2, single buffered']
    %10 = vsyncpa [#allocation3], 0
    %s11 = scalar_lea.sflag [#allocation3], 1
    %12 = vsyncpa %s11, 0
    %13 = vsyncpa [#allocation6], 0
    %14 = vsyncpa [#allocation4], 0
    %s15 = scalar_lea.sflag [#allocation4], 1
    %16 = vsyncpa %s15, 0
    %17 = vsyncpa [#allocation9], 0
    loop: start=0, step=1, limit=6
    $region2: #{tpu_custom_call.1} parent=1 // loop_pre_header
      _
    $region3: #{tpu_custom_call.1} parent=1 // loop_header
      %s19 = sphi 0, %s23
      %p20 = scmp.ge.s32.totalorder %s19, 6
      %s26 = sphi 0, %s38
      %s27 = sphi 0, %s34
      %s28 = sphi 0, %s26
      %s29 = sphi 0, %s27
      %s30 = sphi 0, %s28
      %s31 = sphi 0, %s29
      %s41 = sphi 0, %s43
      %s44 = sphi 0, %s41
      %s45 = sphi 0, %s44
      %s61 = sphi 0, %s45
      %s67 = sphi 0, %s69
      %s70 = sphi 0, %s67
      %s71 = sphi 0, %s70
      %s87 = sphi 0, %s71
      %s95 = sphi 0, %s97
      %s98 = sphi 0, %s95
      %s99 = sphi 0, %s98
      %s115 = sphi 0, %s99
      %s121 = sphi 0, %s123
      %s124 = sphi 0, %s121
      %s125 = sphi 0, %s124
      %s141 = sphi 0, %s125
      %s147 = sphi 0, %s149
      %s150 = sphi 0, %s147
      %s151 = sphi 0, %s150
      %s167 = sphi 0, %s151
    $region4: #{tpu_custom_call.1} parent=1 // loop_header_branch
      %22 = sbr.rel (%p20) target = $region8
    $region5: #{tpu_custom_call.1} parent=1 // loop_body
      %s24 = ssub.s32 %s19, 1
      %s25 = ssub.s32 %s19, 2
      %s32 = sadd.s32 1, %s27
      %p33 = scmp.ge.s32.totalorder %s32, 4
      %s34 = scalar_select %p33, 0, %s32
      %s35 = sadd.s32 1, %s26
      %s36 = scalar_select %p33, %s35, %s26
      %p37 = scmp.ge.s32.totalorder %s36, 1
      %s38 = scalar_select %p37, 0, %s36
      %s39 = ssub.s32 %s27, %s34
      %p40 = scmp.eq.s32.totalorder %s39, 0
      %s42 = sadd.s32 %s41, 1
      %s43 = scalar_select %p40, %s41, %s42
      %p46 = pneg %p40
      %p47 = scmp.eq.s32.totalorder %s19, 3
      %p48 = por %p46, %p47
      %p49 = scmp.ne.s32.totalorder %s41, %s44
      %p50 = scmp.eq.s32.totalorder %s19, 0
      %p51 = por %p49, %p50
      %p52 = scmp.ne.s32.totalorder %s41, %s44
      %p53 = scmp.eq.s32.totalorder %s24, 3
      %p54 = por %p52, %p53
      %p55 = scmp.ne.s32.totalorder %s44, %s45
      %p56 = scmp.eq.s32.totalorder %s24, 0
      %p57 = por %p55, %p56
      %p58 = scmp.ne.s32.totalorder %s44, %s45
      %p59 = scmp.eq.s32.totalorder %s25, 3
      %p60 = por %p58, %p59
      %p62 = scmp.ne.s32.totalorder %s45, %s61
      %p63 = scmp.eq.s32.totalorder %s25, 0
      %p64 = por %p62, %p63
      %s65 = ssub.s32 %s26, %s38
      %p66 = scmp.eq.s32.totalorder %s65, 0
      %s68 = sadd.s32 %s67, 1
      %s69 = scalar_select %p66, %s67, %s68
      %p72 = pneg %p66
      %p73 = scmp.eq.s32.totalorder %s19, 3
      %p74 = por %p72, %p73
      %p75 = scmp.ne.s32.totalorder %s67, %s70
      %p76 = scmp.eq.s32.totalorder %s19, 0
      %p77 = por %p75, %p76
      %p78 = scmp.ne.s32.totalorder %s67, %s70
      %p79 = scmp.eq.s32.totalorder %s24, 3
      %p80 = por %p78, %p79
      %p81 = scmp.ne.s32.totalorder %s70, %s71
      %p82 = scmp.eq.s32.totalorder %s24, 0
      %p83 = por %p81, %p82
      %p84 = scmp.ne.s32.totalorder %s70, %s71
      %p85 = scmp.eq.s32.totalorder %s25, 3
      %p86 = por %p84, %p85
      %p88 = scmp.ne.s32.totalorder %s71, %s87
      %p89 = scmp.eq.s32.totalorder %s25, 0
      %p90 = por %p88, %p89
      %s91 = ssub.s32 %s27, %s34
      %s92 = ssub.s32 %s26, %s38
      %s93 = sor.u32 %s91, %s92
      %p94 = scmp.eq.s32.totalorder %s93, 0
      %s96 = sadd.s32 %s95, 1
      %s97 = scalar_select %p94, %s95, %s96
      %p100 = pneg %p94
      %p101 = scmp.eq.s32.totalorder %s19, 3
      %p102 = por %p100, %p101
      %p103 = scmp.ne.s32.totalorder %s95, %s98
      %p104 = scmp.eq.s32.totalorder %s19, 0
      %p105 = por %p103, %p104
      %p106 = scmp.ne.s32.totalorder %s95, %s98
      %p107 = scmp.eq.s32.totalorder %s24, 3
      %p108 = por %p106, %p107
      %p109 = scmp.ne.s32.totalorder %s98, %s99
      %p110 = scmp.eq.s32.totalorder %s24, 0
      %p111 = por %p109, %p110
      %p112 = scmp.ne.s32.totalorder %s98, %s99
      %p113 = scmp.eq.s32.totalorder %s25, 3
      %p114 = por %p112, %p113
      %p116 = scmp.ne.s32.totalorder %s99, %s115
      %p117 = scmp.eq.s32.totalorder %s25, 0
      %p118 = por %p116, %p117
      %s119 = ssub.s32 %s26, %s38
      %p120 = scmp.eq.s32.totalorder %s119, 0
      %s122 = sadd.s32 %s121, 1
      %s123 = scalar_select %p120, %s121, %s122
      %p126 = pneg %p120
      %p127 = scmp.eq.s32.totalorder %s19, 3
      %p128 = por %p126, %p127
      %p129 = scmp.ne.s32.totalorder %s121, %s124
      %p130 = scmp.eq.s32.totalorder %s19, 0
      %p131 = por %p129, %p130
      %p132 = scmp.ne.s32.totalorder %s121, %s124
      %p133 = scmp.eq.s32.totalorder %s24, 3
      %p134 = por %p132, %p133
      %p135 = scmp.ne.s32.totalorder %s124, %s125
      %p136 = scmp.eq.s32.totalorder %s24, 0
      %p137 = por %p135, %p136
      %p138 = scmp.ne.s32.totalorder %s124, %s125
      %p139 = scmp.eq.s32.totalorder %s25, 3
      %p140 = por %p138, %p139
      %p142 = scmp.ne.s32.totalorder %s125, %s141
      %p143 = scmp.eq.s32.totalorder %s25, 0
      %p144 = por %p142, %p143
      %s145 = ssub.s32 %s26, %s38
      %p146 = scmp.eq.s32.totalorder %s145, 0
      %s148 = sadd.s32 %s147, 1
      %s149 = scalar_select %p146, %s147, %s148
      %p152 = pneg %p146
      %p153 = scmp.eq.s32.totalorder %s19, 3
      %p154 = por %p152, %p153
      %p155 = scmp.ne.s32.totalorder %s147, %s150
      %p156 = scmp.eq.s32.totalorder %s19, 0
      %p157 = por %p155, %p156
      %p158 = scmp.ne.s32.totalorder %s147, %s150
      %p159 = scmp.eq.s32.totalorder %s24, 3
      %p160 = por %p158, %p159
      %p161 = scmp.ne.s32.totalorder %s150, %s151
      %p162 = scmp.eq.s32.totalorder %s24, 0
      %p163 = por %p161, %p162
      %p164 = scmp.ne.s32.totalorder %s150, %s151
      %p165 = scmp.eq.s32.totalorder %s25, 3
      %p166 = por %p164, %p165
      %p168 = scmp.ne.s32.totalorder %s151, %s167
      %p169 = scmp.eq.s32.totalorder %s25, 0
      %p170 = por %p168, %p169
      %p171 = scmp.le.s32.totalorder 1, %s19
      %p172 = scmp.lt.s32.totalorder %s19, 5
      %p173 = pnand %p171, %p172
      %p174 = pneg %p173
      // Predicated region
      $region9: #{tpu_custom_call.1} parent=5 // pred_check
        _
      $region10: #{tpu_custom_call.1} parent=5 // pred_check_branch
        %176 = sbr.rel (%p173) target = $region12
      $region11: #{tpu_custom_call.1} parent=5 // pred_region
        %s177 = ssub.s32 %s19, 1
        // Predicated region
        $region13: #{tpu_custom_call.1} parent=11 // pred_check
          %p178 = pneg %p83
        $region14: #{tpu_custom_call.1} parent=11 // pred_check_branch
          %180 = sbr.rel (%p178) target = $region16
        $region15: #{tpu_custom_call.1} parent=11 // pred_region
          %182 = vsyncadd [#allocation6], 0
          %s183 = smul.addr %s28, 4
          %s184 = scalar_lea.hbm %s1, %s183
          %s185 = sshll.u32 %s184, 4
          %s186 = int_to_ptr.hbm [resolvable:$true] %s185
          %s187 = sshll.u32 [#allocation5], 4
          %s188 = int_to_ptr.vmem [resolvable:$true] %s187
          %193 = dma.hbm_to_vmem [thread:$0]  %s186, 1024, %s188, [#allocation6], 64, 64, 4
        $region16: #{tpu_custom_call.1} parent=11 // pred_fallthru
          _
      $region12: #{tpu_custom_call.1} parent=5 // pred_fallthru
        _
      %p194 = scmp.lt.s32.totalorder %s19, 4
      // Predicated region
      $region17: #{tpu_custom_call.1} parent=5 // pred_check
        %p195 = pneg %p194
      $region18: #{tpu_custom_call.1} parent=5 // pred_check_branch
        %197 = sbr.rel (%p195) target = $region20
      $region19: #{tpu_custom_call.1} parent=5 // pred_region
        // Predicated region
        $region21: #{tpu_custom_call.1} parent=19 // pred_check
          %p198 = pneg %p51
        $region22: #{tpu_custom_call.1} parent=19 // pred_check_branch
          %200 = sbr.rel (%p198) target = $region24
        $region23: #{tpu_custom_call.1} parent=19 // pred_region
          %s201 = sand.u32 %s41, 1
          %s202 = scalar_lea.sflag [#allocation3], %s201
          %s203 = sand.u32 %s41, 1
          %s204 = smul.addr %s203, 64
          %s205 = scalar_lea.vmem [#allocation2], %s204
          %s206 = smul.u32 16, %s27
          %208 = vsyncadd %s202, 0
          %s209 = smul.addr %s206, 4
          %s210 = scalar_lea.hbm %s0, %s209
          %s211 = sshll.u32 %s210, 4
          %s212 = int_to_ptr.hbm [resolvable:$true] %s211
          %s213 = sshll.u32 %s205, 4
          %s214 = int_to_ptr.vmem [resolvable:$true] %s213
          %219 = dma.hbm_to_vmem [thread:$0]  %s212, 1024, %s214, %s202, 64, 64, 4
        $region24: #{tpu_custom_call.1} parent=19 // pred_fallthru
          _
      $region20: #{tpu_custom_call.1} parent=5 // pred_fallthru
        _
      %p220 = scmp.le.s32.totalorder 1, %s19
      %p221 = scmp.lt.s32.totalorder %s19, 5
      %p222 = pnand %p220, %p221
      %p223 = pneg %p222
      // Predicated region
      $region25: #{tpu_custom_call.1} parent=5 // pred_check
        _
      $region26: #{tpu_custom_call.1} parent=5 // pred_check_branch
        %225 = sbr.rel (%p222) target = $region28
      $region27: #{tpu_custom_call.1} parent=5 // pred_region
        %s226 = ssub.s32 %s19, 1
        %s227 = sand.u32 %s44, 1
        %s228 = scalar_lea.sflag [#allocation3], %s227
        %s229 = sand.u32 %s44, 1
        %s230 = smul.addr %s229, 64
        %s231 = scalar_lea.vmem [#allocation2], %s230
        // Predicated region
        $region29: #{tpu_custom_call.1} parent=27 // pred_check
          %p232 = pneg %p57
        $region30: #{tpu_custom_call.1} parent=27 // pred_check_branch
          %234 = sbr.rel (%p232) target = $region32
        $region31: #{tpu_custom_call.1} parent=27 // pred_region
          %236 = dma.done %s228, 1024
        $region32: #{tpu_custom_call.1} parent=27 // pred_fallthru
          _
        // Predicated region
        $region33: #{tpu_custom_call.1} parent=27 // pred_check
          %p237 = pneg %p83
        $region34: #{tpu_custom_call.1} parent=27 // pred_check_branch
          %239 = sbr.rel (%p237) target = $region36
        $region35: #{tpu_custom_call.1} parent=27 // pred_region
          %241 = dma.done [#allocation6], 1024
        $region36: #{tpu_custom_call.1} parent=27 // pred_fallthru
          _
        %s242 = sand.u32 %s44, 1
        %s243 = scalar_lea.sflag [#allocation3], %s242
        %s244 = sand.u32 %s44, 1
        %s245 = smul.addr %s244, 64
        %s246 = scalar_lea.vmem [#allocation2], %s245
        %p247 = pneg %p57
        %p248 = pneg %p54
        %p249 = pneg %p83
        %p250 = pneg %p80
        %p251 = pneg %p111
        %p252 = pneg %p108
        %s253 = sand.u32 %s98, 1
        %s254 = scalar_lea.sflag [#allocation4], %s253
        %s255 = sand.u32 %s98, 1
        %s256 = smul.addr %s255, 64
        %s257 = scalar_lea.vmem [#allocation7], %s256
        %p258 = pneg %p137
        %p259 = pneg %p134
        %p260 = pneg %p163
        %p261 = pneg %p160
        %s262 = smul.u32 16, %s29
        %s263 = smul.u32 16, %s29
        %p264 = scmp.eq.s32.totalorder %s29, 0
        // Predicated region
        $region37: #{tpu_custom_call.1} parent=27 // pred_check
          %p265 = pneg %p264
        $region38: #{tpu_custom_call.1} parent=27 // pred_check_branch
          %267 = sbr.rel (%p265) target = $region40
        $region39: #{tpu_custom_call.1} parent=27 // pred_region
          %268 = vst [vmem:[#allocation8] sm:$0x1] 0.0
          %269 = vst [vmem:[#allocation10] sm:$0x1] 0.0
        $region40: #{tpu_custom_call.1} parent=27 // pred_fallthru
          _
        %v270 = vld [vmem:[%s231] sm:$0xf]
        %v271 = vld [vmem:[%s231 + $0x4] sm:$0xf]
        %v272 = vld [vmem:[%s231 + $0x8] sm:$0xf]
        %v273 = vld [vmem:[%s231 + $0xc] sm:$0xf]
        %v274 = vld [vmem:[%s231 + $0x10] sm:$0xf]
        %v275 = vld [vmem:[%s231 + $0x14] sm:$0xf]
        %v276 = vld [vmem:[%s231 + $0x18] sm:$0xf]
        %v277 = vld [vmem:[%s231 + $0x1c] sm:$0xf]
        %v278 = vld [vmem:[%s231 + $0x20] sm:$0xf]
        %v279 = vld [vmem:[%s231 + $0x24] sm:$0xf]
        %v280 = vld [vmem:[%s231 + $0x28] sm:$0xf]
        %v281 = vld [vmem:[%s231 + $0x2c] sm:$0xf]
        %v282 = vld [vmem:[%s231 + $0x30] sm:$0xf]
        %v283 = vld [vmem:[%s231 + $0x34] sm:$0xf]
        %v284 = vld [vmem:[%s231 + $0x38] sm:$0xf]
        %v285 = vld [vmem:[%s231 + $0x3c] sm:$0xf]
        %v286 = vld [vmem:[#allocation5] sm:$0xf]
        %v287 = vld [vmem:[#allocation5 + $0x4] sm:$0xf]
        %v288 = vld [vmem:[#allocation5 + $0x8] sm:$0xf]
        %v289 = vld [vmem:[#allocation5 + $0xc] sm:$0xf]
        %v290 = vld [vmem:[#allocation5 + $0x10] sm:$0xf]
        %v291 = vld [vmem:[#allocation5 + $0x14] sm:$0xf]
        %v292 = vld [vmem:[#allocation5 + $0x18] sm:$0xf]
        %v293 = vld [vmem:[#allocation5 + $0x1c] sm:$0xf]
        %v294 = vld [vmem:[#allocation5 + $0x20] sm:$0xf]
        %v295 = vld [vmem:[#allocation5 + $0x24] sm:$0xf]
        %v296 = vld [vmem:[#allocation5 + $0x28] sm:$0xf]
        %v297 = vld [vmem:[#allocation5 + $0x2c] sm:$0xf]
        %v298 = vld [vmem:[#allocation5 + $0x30] sm:$0xf]
        %v299 = vld [vmem:[#allocation5 + $0x34] sm:$0xf]
        %v300 = vld [vmem:[#allocation5 + $0x38] sm:$0xf]
        %v301 = vld [vmem:[#allocation5 + $0x3c] sm:$0xf]
        %v318 = vunpack.c.l.b16 %v270
        %v319 = vunpack.c.l.b16 %v271
        %v320 = vunpack.c.l.b16 %v272
        %v321 = vunpack.c.l.b16 %v273
        %v322 = vunpack.c.l.b16 %v274
        %v323 = vunpack.c.l.b16 %v275
        %v324 = vunpack.c.l.b16 %v276
        %v325 = vunpack.c.l.b16 %v277
        %v326 = vunpack.c.l.b16 %v278
        %v327 = vunpack.c.l.b16 %v279
        %v328 = vunpack.c.l.b16 %v280
        %v329 = vunpack.c.l.b16 %v281
        %v330 = vunpack.c.l.b16 %v282
        %v331 = vunpack.c.l.b16 %v283
        %v332 = vunpack.c.l.b16 %v284
        %v333 = vunpack.c.l.b16 %v285
        %v334 = vpack.c.b16 %v319, %v318
        %v335 = vpack.c.b16 %v321, %v320
        %v336 = vpack.c.b16 %v323, %v322
        %v337 = vpack.c.b16 %v325, %v324
        %v338 = vpack.c.b16 %v327, %v326
        %v339 = vpack.c.b16 %v329, %v328
        %v340 = vpack.c.b16 %v331, %v330
        %v341 = vpack.c.b16 %v333, %v332
        %v366 = vunpack.c.l.b16 %v286
        %v367 = vunpack.c.l.b16 %v287
        %v368 = vunpack.c.l.b16 %v288
        %v369 = vunpack.c.l.b16 %v289
        %v370 = vunpack.c.l.b16 %v290
        %v371 = vunpack.c.l.b16 %v291
        %v372 = vunpack.c.l.b16 %v292
        %v373 = vunpack.c.l.b16 %v293
        %v374 = vunpack.c.l.b16 %v294
        %v375 = vunpack.c.l.b16 %v295
        %v376 = vunpack.c.l.b16 %v296
        %v377 = vunpack.c.l.b16 %v297
        %v378 = vunpack.c.l.b16 %v298
        %v379 = vunpack.c.l.b16 %v299
        %v380 = vunpack.c.l.b16 %v300
        %v381 = vunpack.c.l.b16 %v301
        %v382 = vpack.c.b16 %v367, %v366
        %v383 = vpack.c.b16 %v369, %v368
        %v384 = vpack.c.b16 %v371, %v370
        %v385 = vpack.c.b16 %v373, %v372
        %v386 = vpack.c.b16 %v375, %v374
        %v387 = vpack.c.b16 %v377, %v376
        %v388 = vpack.c.b16 %v379, %v378
        %v389 = vpack.c.b16 %v381, %v380
        %398 = vmatpush.bf16.msra.mxu0 %v389
        %399 = vmatpush.bf16.msra.mxu0 %v388
        %400 = vmatpush.bf16.msra.mxu0 %v387
        %401 = vmatpush.bf16.msra.mxu0 %v386
        %402 = vmatpush.bf16.msra.mxu0 %v385
        %403 = vmatpush.bf16.msra.mxu0 %v384
        %404 = vmatpush.bf16.msra.mxu0 %v383
        %405 = vmatpush.bf16.msra.mxu0 %v382
        %406 = vmatmul.bf16.gmra.mxu0 %v334
        %v407 = vpop.f32.mrf.mxu0
        %v408 = vadd.f32 0.0, %v407
        %v409 = vpop.f32.mrf.mxu0
        %v410 = vadd.f32 0.0, %v409
        %411 = vmatmul.bf16.gmra.mxu0 %v335
        %v412 = vpop.f32.mrf.mxu0
        %v413 = vadd.f32 0.0, %v412
        %v414 = vpop.f32.mrf.mxu0
        %v415 = vadd.f32 0.0, %v414
        %416 = vmatmul.bf16.gmra.mxu0 %v336
        %v417 = vpop.f32.mrf.mxu0
        %v418 = vadd.f32 0.0, %v417
        %v419 = vpop.f32.mrf.mxu0
        %v420 = vadd.f32 0.0, %v419
        %421 = vmatmul.bf16.gmra.mxu0 %v337
        %v422 = vpop.f32.mrf.mxu0
        %v423 = vadd.f32 0.0, %v422
        %v424 = vpop.f32.mrf.mxu0
        %v425 = vadd.f32 0.0, %v424
        %426 = vmatmul.bf16.gmra.mxu0 %v338
        %v427 = vpop.f32.mrf.mxu0
        %v428 = vadd.f32 0.0, %v427
        %v429 = vpop.f32.mrf.mxu0
        %v430 = vadd.f32 0.0, %v429
        %431 = vmatmul.bf16.gmra.mxu0 %v339
        %v432 = vpop.f32.mrf.mxu0
        %v433 = vadd.f32 0.0, %v432
        %v434 = vpop.f32.mrf.mxu0
        %v435 = vadd.f32 0.0, %v434
        %436 = vmatmul.bf16.gmra.mxu0 %v340
        %v437 = vpop.f32.mrf.mxu0
        %v438 = vadd.f32 0.0, %v437
        %v439 = vpop.f32.mrf.mxu0
        %v440 = vadd.f32 0.0, %v439
        %441 = vmatmul.bf16.gmra.mxu0 %v341
        %v442 = vpop.f32.mrf.mxu0
        %v443 = vadd.f32 0.0, %v442
        %v444 = vpop.f32.mrf.mxu0
        %v445 = vadd.f32 0.0, %v444
        %446 = vdwg.mxu0
        %v447 = vpack.c.bf16 %v408, %v408
        %v448 = vpack.c.bf16 %v410, %v410
        %v449 = vpack.c.bf16 %v413, %v413
        %v450 = vpack.c.bf16 %v415, %v415
        %v451 = vpack.c.bf16 %v418, %v418
        %v452 = vpack.c.bf16 %v420, %v420
        %v453 = vpack.c.bf16 %v423, %v423
        %v454 = vpack.c.bf16 %v425, %v425
        %v455 = vpack.c.bf16 %v428, %v428
        %v456 = vpack.c.bf16 %v430, %v430
        %v457 = vpack.c.bf16 %v433, %v433
        %v458 = vpack.c.bf16 %v435, %v435
        %v459 = vpack.c.bf16 %v438, %v438
        %v460 = vpack.c.bf16 %v440, %v440
        %v461 = vpack.c.bf16 %v443, %v443
        %v462 = vpack.c.bf16 %v445, %v445
        %463 = vst [vmem:[%s257] sm:$0xf] %v447
        %464 = vst [vmem:[%s257 + $0x4] sm:$0xf] %v448
        %465 = vst [vmem:[%s257 + $0x8] sm:$0xf] %v449
        %466 = vst [vmem:[%s257 + $0xc] sm:$0xf] %v450
        %467 = vst [vmem:[%s257 + $0x10] sm:$0xf] %v451
        %468 = vst [vmem:[%s257 + $0x14] sm:$0xf] %v452
        %469 = vst [vmem:[%s257 + $0x18] sm:$0xf] %v453
        %470 = vst [vmem:[%s257 + $0x1c] sm:$0xf] %v454
        %471 = vst [vmem:[%s257 + $0x20] sm:$0xf] %v455
        %472 = vst [vmem:[%s257 + $0x24] sm:$0xf] %v456
        %473 = vst [vmem:[%s257 + $0x28] sm:$0xf] %v457
        %474 = vst [vmem:[%s257 + $0x2c] sm:$0xf] %v458
        %475 = vst [vmem:[%s257 + $0x30] sm:$0xf] %v459
        %476 = vst [vmem:[%s257 + $0x34] sm:$0xf] %v460
        %477 = vst [vmem:[%s257 + $0x38] sm:$0xf] %v461
        %478 = vst [vmem:[%s257 + $0x3c] sm:$0xf] %v462
        %v479 = vld [vmem:[#allocation8] sm:$0x1]
        %v480 = vadd.f32 %v408, %v410
        %v481 = vadd.f32 %v480, %v413
        %v482 = vadd.f32 %v481, %v415
        %v483 = vadd.f32 %v482, %v418
        %v484 = vadd.f32 %v483, %v420
        %v485 = vadd.f32 %v484, %v423
        %v486 = vadd.f32 %v485, %v425
        %v487 = vadd.f32 %v486, %v428
        %v488 = vadd.f32 %v487, %v430
        %v489 = vadd.f32 %v488, %v433
        %v490 = vadd.f32 %v489, %v435
        %v491 = vadd.f32 %v490, %v438
        %v492 = vadd.f32 %v491, %v440
        %v493 = vadd.f32 %v492, %v443
        %v494 = vadd.f32 %v493, %v445
        %v495 = vrot.slane %v494, 4
        %v496 = vadd.f32 %v494, %v495
        %v497 = vrot.slane %v496, 2
        %v498 = vadd.f32 %v496, %v497
        %v499 = vrot.slane %v498, 1
        %v500 = vadd.f32 %v498, %v499
        %v501 = vadd.f32 %v479, %v500
        %502 = vst [vmem:[#allocation8] sm:$0x1] %v501
        %v503 = vld [vmem:[#allocation10] sm:$0x1]
        %v504 = vmul.f32 %v408, %v408
        %v505 = vmul.f32 %v410, %v410
        %v506 = vmul.f32 %v413, %v413
        %v507 = vmul.f32 %v415, %v415
        %v508 = vmul.f32 %v418, %v418
        %v509 = vmul.f32 %v420, %v420
        %v510 = vmul.f32 %v423, %v423
        %v511 = vmul.f32 %v425, %v425
        %v512 = vmul.f32 %v428, %v428
        %v513 = vmul.f32 %v430, %v430
        %v514 = vmul.f32 %v433, %v433
        %v515 = vmul.f32 %v435, %v435
        %v516 = vmul.f32 %v438, %v438
        %v517 = vmul.f32 %v440, %v440
        %v518 = vmul.f32 %v443, %v443
        %v519 = vmul.f32 %v445, %v445
        %v520 = vadd.f32 %v504, %v505
        %v521 = vadd.f32 %v520, %v506
        %v522 = vadd.f32 %v521, %v507
        %v523 = vadd.f32 %v522, %v508
        %v524 = vadd.f32 %v523, %v509
        %v525 = vadd.f32 %v524, %v510
        %v526 = vadd.f32 %v525, %v511
        %v527 = vadd.f32 %v526, %v512
        %v528 = vadd.f32 %v527, %v513
        %v529 = vadd.f32 %v528, %v514
        %v530 = vadd.f32 %v529, %v515
        %v531 = vadd.f32 %v530, %v516
        %v532 = vadd.f32 %v531, %v517
        %v533 = vadd.f32 %v532, %v518
        %v534 = vadd.f32 %v533, %v519
        %v535 = vrot.slane %v534, 4
        %v536 = vadd.f32 %v534, %v535
        %v537 = vrot.slane %v536, 2
        %v538 = vadd.f32 %v536, %v537
        %v539 = vrot.slane %v538, 1
        %v540 = vadd.f32 %v538, %v539
        %v541 = vadd.f32 %v503, %v540
        %542 = vst [vmem:[#allocation10] sm:$0x1] %v541
        %s543 = sand.u32 %s98, 1
        %s544 = scalar_lea.sflag [#allocation4], %s543
        %s545 = sand.u32 %s98, 1
        %s546 = smul.addr %s545, 64
        %s547 = scalar_lea.vmem [#allocation7], %s546
        // Predicated region
        $region41: #{tpu_custom_call.1} parent=27 // pred_check
          %p548 = pneg %p108
        $region42: #{tpu_custom_call.1} parent=27 // pred_check_branch
          %550 = sbr.rel (%p548) target = $region44
        $region43: #{tpu_custom_call.1} parent=27 // pred_region
          %s551 = smul.u32 16, %s29
          %553 = vsyncadd %s544, 0
          %s554 = sadd.s32 %s28, %s551
          %s555 = smul.addr %s554, 4
          %s556 = scalar_lea.hbm %s2, %s555
          %s557 = sshll.u32 %s547, 4
          %s558 = int_to_ptr.vmem [resolvable:$true] %s557
          %s559 = sshll.u32 %s556, 4
          %s560 = int_to_ptr.hbm [resolvable:$true] %s559
          %565 = dma.vmem_to_hbm [thread:$0]  %s558, 1024, %s560, %s544, 64, 64, 4
        $region44: #{tpu_custom_call.1} parent=27 // pred_fallthru
          _
        // Predicated region
        $region45: #{tpu_custom_call.1} parent=27 // pred_check
          %p566 = pneg %p134
        $region46: #{tpu_custom_call.1} parent=27 // pred_check_branch
          %568 = sbr.rel (%p566) target = $region48
        $region47: #{tpu_custom_call.1} parent=27 // pred_region
          %570 = vsyncadd [#allocation9], 0
          %s571 = scalar_lea.hbm %s3, %s28
          %s573 = sshll.u32 [#allocation8], 4
          %s574 = int_to_ptr.vmem [resolvable:$true] %s573
          %s575 = sshll.u32 %s571, 4
          %s576 = int_to_ptr.hbm [resolvable:$true] %s575
          %578 = dma.vmem_to_hbm [thread:$0]  %s574, 16, %s576, [#allocation9]
        $region48: #{tpu_custom_call.1} parent=27 // pred_fallthru
          _
        // Predicated region
        $region49: #{tpu_custom_call.1} parent=27 // pred_check
          %p579 = pneg %p160
        $region50: #{tpu_custom_call.1} parent=27 // pred_check_branch
          %581 = sbr.rel (%p579) target = $region52
        $region51: #{tpu_custom_call.1} parent=27 // pred_region
          %583 = vsyncadd [#allocation9], 0
          %s584 = scalar_lea.hbm %s4, %s28
          %s586 = sshll.u32 [#allocation10], 4
          %s587 = int_to_ptr.vmem [resolvable:$true] %s586
          %s588 = sshll.u32 %s584, 4
          %s589 = int_to_ptr.hbm [resolvable:$true] %s588
          %591 = dma.vmem_to_hbm [thread:$0]  %s587, 16, %s589, [#allocation9]
        $region52: #{tpu_custom_call.1} parent=27 // pred_fallthru
          _
        // Predicated region
        $region53: #{tpu_custom_call.1} parent=27 // pred_check
          %p592 = pneg %p134
        $region54: #{tpu_custom_call.1} parent=27 // pred_check_branch
          %594 = sbr.rel (%p592) target = $region56
        $region55: #{tpu_custom_call.1} parent=27 // pred_region
          %596 = dma.done [#allocation9], 16
        $region56: #{tpu_custom_call.1} parent=27 // pred_fallthru
          _
        // Predicated region
        $region57: #{tpu_custom_call.1} parent=27 // pred_check
          %p597 = pneg %p160
        $region58: #{tpu_custom_call.1} parent=27 // pred_check_branch
          %599 = sbr.rel (%p597) target = $region60
        $region59: #{tpu_custom_call.1} parent=27 // pred_region
          %601 = dma.done [#allocation9], 16
        $region60: #{tpu_custom_call.1} parent=27 // pred_fallthru
          _
      $region28: #{tpu_custom_call.1} parent=5 // pred_fallthru
        _
      %p602 = scmp.le.s32.totalorder 2, %s19
      // Predicated region
      $region61: #{tpu_custom_call.1} parent=5 // pred_check
        %p603 = pneg %p602
      $region62: #{tpu_custom_call.1} parent=5 // pred_check_branch
        %605 = sbr.rel (%p603) target = $region64
      $region63: #{tpu_custom_call.1} parent=5 // pred_region
        %s606 = ssub.s32 %s19, 2
        // Predicated region
        $region65: #{tpu_custom_call.1} parent=63 // pred_check
          %p607 = pneg %p114
        $region66: #{tpu_custom_call.1} parent=63 // pred_check_branch
          %609 = sbr.rel (%p607) target = $region68
        $region67: #{tpu_custom_call.1} parent=63 // pred_region
          %s610 = sand.u32 %s99, 1
          %s611 = scalar_lea.sflag [#allocation4], %s610
          %s612 = sand.u32 %s99, 1
          %s613 = smul.addr %s612, 64
          %s614 = scalar_lea.vmem [#allocation7], %s613
          %616 = dma.done %s611, 1024
        $region68: #{tpu_custom_call.1} parent=63 // pred_fallthru
          _
      $region64: #{tpu_custom_call.1} parent=5 // pred_fallthru
        _
    $region6: #{tpu_custom_call.1} parent=1 // loop_footer
      %s23 = sadd.s32 1, %s19
    $region7: #{tpu_custom_call.1} parent=1 // loop_footer_branch
      %18 = sbr.rel target = $region3
    $region8: #{tpu_custom_call.1} parent=1 // loop_exit
      _
    %617 = vsyncpa [#allocation3], 1
    %s618 = scalar_lea.sflag [#allocation3], 1
    %619 = vsyncpa %s618, 1
    %620 = vsyncpa [#allocation6], 1
    %621 = vsyncpa [#allocation4], 1
    %s622 = scalar_lea.sflag [#allocation4], 1
    %623 = vsyncpa %s622, 1
    %624 = vsyncpa [#allocation9], 1

</llo_original>
